<compile_context>
chip_gen: v7x
topology: tpu7x:2x2x1
jax: 0.10.0
libtpu: 0.0.40
codegen_flags: <defaults>
</compile_context>

<pallas_src>
import math

import jax
import jax.numpy as jnp
from jax.experimental import pallas as pl
from jax.experimental.pallas import tpu as pltpu

_LANE = 128
_SUBLANE = 8
# Cap on the materialized (pre-tiled) weight row.
_MAX_LANE_WIDTH_BYTES = 1 << 20  # 1 MiB


def _default_block_bytes():
    """Per-generation block-byte budget (per buffer)."""
    try:
        kind = jax.devices()[0].device_kind.lower()
    except Exception:
        return 2 * 1024 * 1024
    if "v7" in kind or "7x" in kind:
        # 4 x 6 MiB = 24 MiB double-buffered working set < 32 MiB scoped default.
        return 6 * 1024 * 1024
    if "v6" in kind:
        # 4 x 4 MiB = 16 MiB < 32 MiB scoped default.
        return 4 * 1024 * 1024
    # v5e & others: 4 x 2 MiB = 8 MiB < 16 MiB scoped default.
    return 2 * 1024 * 1024


def _round_down(v, m):
    return (v // m) * m


def _rescale_kernel(w_ref, x_ref, o_ref):
    # w_ref: (1, L) VMEM tile; x_ref / o_ref: (TILE_M, L) VMEM tiles.
    # The per-lane weight row broadcasts over the sublane (row) axis.
    # jnp promotion handles mixed dtypes (e.g. bf16 x * f32 w -> f32).
    o_ref[...] = (x_ref[...] * w_ref[...]).astype(o_ref.dtype)


def rescale(x, weight, *, target_block_bytes=None):
    """Per-channel rescale: weight (1, 1, C) * x (B, S, C) -> (B, S, C)."""
    B, S, C = x.shape
    assert weight.shape == (1, 1, C)

    if target_block_bytes is None:
        target_block_bytes = _default_block_bytes()

    # PyTorch-style promotion: output dtype is the promoted dtype of both.
    out_dtype = jnp.result_type(x.dtype, weight.dtype)
    in_itemsize = jnp.dtype(x.dtype).itemsize
    out_itemsize = jnp.dtype(out_dtype).itemsize
    budget_itemsize = max(in_itemsize, out_itemsize)   # VMEM budgeting
    min_itemsize = min(in_itemsize, out_itemsize)      # sublane packing
    sublane_align = max(_SUBLANE, 32 // min_itemsize)  # 8 f32 / 16 bf16 / 32 int8

    w = weight.reshape(C).astype(out_dtype)
    n_elems = B * S * C

    # ---- Lane-width selection: make rows lane-dense whenever possible. ----
    lcm_val = math.lcm(C, _LANE)
    if n_elems % lcm_val == 0 and lcm_val * budget_itemsize <= _MAX_LANE_WIDTH_BYTES:
        lane_width = lcm_val
        reps = lcm_val // C
        w_row = (jnp.tile(w, reps) if reps > 1 else w).reshape(1, lane_width)
    else:
        # TODO(synk): when n_elems % lcm(C,128) != 0 the last dim stays C and
        # stores may be masked (vst.msk); correctness is unaffected.
        lane_width = C
        w_row = w.reshape(1, C)

    rows = n_elems // lane_width
    x2 = x.reshape(rows, lane_width)
    bytes_per_row = lane_width * budget_itemsize

    if bytes_per_row <= target_block_bytes:
        # ------------------ 1-D row-tiled grid ------------------
        tile_m = max(
            sublane_align,
            _round_down(target_block_bytes // bytes_per_row, sublane_align),
        )
        # Keep >= ~4 grid steps for large inputs so the "parallel" axis can
        # shard across both v7x TensorCores (and stay well-pipelined).
        min_steps = 4
        if rows >= min_steps * sublane_align:
            cap = max(
                sublane_align,
                _round_down(-(-rows // min_steps), sublane_align),
            )
            tile_m = min(tile_m, cap)
        tile_m = min(tile_m, rows)  # full-extent block is always layout-legal

        grid = (pl.cdiv(rows, tile_m),)
        in_specs = [
            pl.BlockSpec((1, lane_width), lambda i: (0, 0)),      # weight row
            pl.BlockSpec((tile_m, lane_width), lambda i: (i, 0)),  # x row tile
        ]
        out_spec = pl.BlockSpec((tile_m, lane_width), lambda i: (i, 0))
        dim_sem = ("parallel",)
    else:
        # -------- 2-D grid: also tile the lane axis (very large C) --------
        tile_n = max(_LANE, _round_down(target_block_bytes // budget_itemsize, _LANE))
        tile_n = min(tile_n, lane_width)
        tile_m = max(
            sublane_align,
            _round_down(target_block_bytes // (tile_n * budget_itemsize), sublane_align),
        )
        tile_m = min(tile_m, rows)

        grid = (pl.cdiv(rows, tile_m), pl.cdiv(lane_width, tile_n))
        in_specs = [
            pl.BlockSpec((1, tile_n), lambda i, j: (0, j)),       # weight slice
            pl.BlockSpec((tile_m, tile_n), lambda i, j: (i, j)),  # x tile
        ]
        out_spec = pl.BlockSpec((tile_m, tile_n), lambda i, j: (i, j))
        dim_sem = ("parallel", "parallel")

    out2 = pl.pallas_call(
        _rescale_kernel,
        out_shape=jax.ShapeDtypeStruct((rows, lane_width), out_dtype),
        grid_spec=pltpu.PrefetchScalarGridSpec(
            num_scalar_prefetch=0,
            grid=grid,
            in_specs=in_specs,
            out_specs=out_spec,
        ),
        compiler_params=pltpu.CompilerParams(
            dimension_semantics=dim_sem,
        ),
    )(w_row, x2)

    return out2.reshape(B, S, C)


if __name__ == "__main__":
    key = jax.random.PRNGKey(0)
    kx, kw, kx2, kx3, kx4, kx5 = jax.random.split(key, 6)

    # --- 1) Small shape consistent with the module (B, S, C), f32 ---
    B, S, C = 2, 8, 32
    x = jax.random.normal(kx, (B, S, C), dtype=jnp.float32)
    weight = jnp.ones((1, 1, C), dtype=jnp.float32) + 0.1 * jax.random.normal(
        kw, (1, 1, C), dtype=jnp.float32
    )
    out = jax.block_until_ready(rescale(x, weight))
    ref = weight * x
    assert out.shape == (B, S, C) and out.dtype == jnp.float32
    assert jnp.allclose(out, ref, atol=1e-6, rtol=1e-6)

    # --- 2) Multi-step 1-D grid (tiny block budget exercises the pipeline) ---
    B2, S2 = 2, 64
    x_big = jax.random.normal(kx2, (B2, S2, C), dtype=jnp.float32)
    out_big = jax.block_until_ready(
        rescale(x_big, weight, target_block_bytes=_SUBLANE * _LANE * 4)
    )
    assert jnp.allclose(out_big, weight * x_big, atol=1e-6, rtol=1e-6)

    # --- 3) lcm lane-widening path: C=96 (neither divides nor divided by 128) ---
    C3 = 96
    x3 = jax.random.normal(kx3, (2, 12, C3), dtype=jnp.float32)
    w3 = jnp.ones((1, 1, C3), dtype=jnp.float32) + 0.1 * jax.random.normal(
        kw, (1, 1, C3), dtype=jnp.float32
    )
    out3 = jax.block_until_ready(rescale(x3, w3))
    assert jnp.allclose(out3, w3 * x3, atol=1e-6, rtol=1e-6)

    # --- 4) Mixed dtypes: bf16 x * f32 weight -> f32 output (PyTorch promotion) ---
    x4 = jax.random.normal(kx4, (2, 16, C), dtype=jnp.bfloat16)
    out4 = jax.block_until_ready(rescale(x4, weight))
    ref4 = weight * x4.astype(jnp.float32)
    assert out4.dtype == jnp.float32
    assert jnp.allclose(out4, ref4, atol=1e-5, rtol=1e-5)

    # --- 5) 2-D lane-tiled path: wide rows vs. a tiny block budget ---
    C5 = 1024
    x5 = jax.random.normal(kx5, (2, 8, C5), dtype=jnp.float32)
    w5 = jnp.ones((1, 1, C5), dtype=jnp.float32) + 0.1 * jax.random.normal(
        kw, (1, 1, C5), dtype=jnp.float32
    )
    out5 = jax.block_until_ready(rescale(x5, w5, target_block_bytes=2048))
    assert jnp.allclose(out5, w5 * x5, atol=1e-6, rtol=1e-6)

    print("KERNEL_OK")
</pallas_src>

<mosaic_0001>
module attributes {stable_mosaic.version = 11 : i64} {
  func.func @_rescale_kernel(%arg0: i32, %arg1: memref<1x128xf32, #tpu.memory_space<vmem>>, %arg2: memref<4x128xf32, #tpu.memory_space<vmem>>, %arg3: memref<4x128xf32, #tpu.memory_space<vmem>>) attributes {dimension_semantics = [#tpu.dimension_semantics<parallel>], iteration_bounds = array<i64: 1>, scalar_prefetch = 0 : i64, scratch_operands = 0 : i64, tpu.core_type = #tpu.core_type<tc>, window_params = [{pipeline_mode = #tpu.pipeline_mode<synchronous>, transform_indices = @transform_0, window_bounds = array<i64: 1, 128>}, {transform_indices = @transform_1, window_bounds = array<i64: 4, 128>}, {transform_indices = @transform_2, window_bounds = array<i64: 4, 128>}]} {
    %c0 = arith.constant 0 : index
    %c0_0 = arith.constant 0 : index
    %0 = vector.load %arg2[%c0, %c0_0] : memref<4x128xf32, #tpu.memory_space<vmem>>, vector<4x128xf32>
    %c0_1 = arith.constant 0 : index
    %c0_2 = arith.constant 0 : index
    %1 = vector.load %arg1[%c0_1, %c0_2] : memref<1x128xf32, #tpu.memory_space<vmem>>, vector<1x128xf32>
    %2 = vector.broadcast %1 : vector<1x128xf32> to vector<4x128xf32>
    %3 = arith.mulf %0, %2 : vector<4x128xf32>
    %c0_3 = arith.constant 0 : index
    %c0_4 = arith.constant 0 : index
    %4 = vector.load %arg3[%c0_3, %c0_4] : memref<4x128xf32, #tpu.memory_space<vmem>>, vector<4x128xf32>
    tpu.vector_store %arg3[%c0_3, %c0_4], %3 {strides = array<i32>} : memref<4x128xf32, #tpu.memory_space<vmem>>, vector<4x128xf32>,
    return
  }
  func.func @transform_0(%arg0: i32) -> (i32, i32) {
    %c0_i32 = arith.constant 0 : i32
    %c0_i32_0 = arith.constant 0 : i32
    %c0_i32_1 = arith.constant 0 : i32
    return %c0_i32, %c0_i32_0 : i32, i32
  }
  func.func @transform_1(%arg0: i32) -> (i32, i32) {
    %c0_i32 = arith.constant 0 : i32
    %c0_i32_0 = arith.constant 0 : i32
    return %arg0, %c0_i32 : i32, i32
  }
  func.func @transform_2(%arg0: i32) -> (i32, i32) {
    %c0_i32 = arith.constant 0 : i32
    %c0_i32_0 = arith.constant 0 : i32
    return %arg0, %c0_i32 : i32, i32
  }
}

</mosaic_0001>

<llo_original>
// kernel: tpu_custom_call.1
$region0: #{tpu_custom_call.1}
  #allocation0 [shape = 'u32[]', space=smem, size = 0x4, offset = 0x4, fixed_abs, tag = 'smem constant byte address 0x4 - core index']
  #allocation1 [shape = 'u32[144,128]{1,0:T(1,128)}', space=vmem, size = 0x12000, scoped, tag = 'internal scratch']
  %s0 = inlined_call_operand.hbm [shape: f32[1,128], index: 0, kind: input, shape index: {}]
  %s1 = inlined_call_operand.hbm [shape: f32[4,128], index: 1, kind: input, shape index: {}]
  %s2 = inlined_call_operand.hbm [shape: f32[4,128], index: 2, kind: output, shape index: {}]
  %s3 = sld [smem:[#allocation0]]
  $region26: #{tpu_custom_call.1} parent=0
    _
  %s5 = ssub.s32 1, %s3
  %s6 = scalar_select 0, %s5, %s3
  $region1: #{tpu_custom_call.1} parent=0
    #allocation2 [shape = 'u8[512]{0}', space=vmem, size = 0x400, scoped, tag = 'input window, operand 0, single buffered']
    #allocation3 [shape = 's32[1]{0}', space=sflag, size = 0x4, scoped, tag = 'scoped memory for tpu_custom_call.1']
    #allocation4 [shape = 's32[1]{0}', space=sflag, size = 0x4, scoped, tag = 'scoped memory for tpu_custom_call.1']
    #allocation5 [shape = 'u8[2048]{0}', space=vmem, size = 0x800, scoped, tag = 'input window, operand 1, single buffered']
    #allocation6 [shape = 's32[1]{0}', space=sflag, size = 0x4, scoped, tag = 'scoped memory for tpu_custom_call.1']
    #allocation7 [shape = 'u8[2048]{0}', space=vmem, size = 0x800, scoped, tag = 'output window, operand 0, single buffered']
    %7 = vsyncpa [#allocation3], 0
    %8 = vsyncpa [#allocation6], 0
    %9 = vsyncpa [#allocation4], 0
    // Predicated region
    $region2: #{tpu_custom_call.1} parent=1 // pred_check
      _
    $region3: #{tpu_custom_call.1} parent=1 // pred_check_branch
      %11 = sbr.rel (0) target = $region5
    $region4: #{tpu_custom_call.1} parent=1 // pred_region
      %s13 = ssub.s32 16, 16
      %14 = vsyncadd [#allocation3], %s13
      %s16 = sshll.u32 [#allocation2], 4
      %s17 = int_to_ptr.vmem [resolvable:$true] %s16
      %19 = dma.hbm_to_vmem [thread:$0]  %s0, 16, %s17, [#allocation3]
    $region5: #{tpu_custom_call.1} parent=1 // pred_fallthru
      _
    // Predicated region
    $region6: #{tpu_custom_call.1} parent=1 // pred_check
      _
    $region7: #{tpu_custom_call.1} parent=1 // pred_check_branch
      %21 = sbr.rel (0) target = $region9
    $region8: #{tpu_custom_call.1} parent=1 // pred_region
      %s23 = ssub.s32 64, 64
      %24 = vsyncadd [#allocation6], %s23
      %s26 = sshll.u32 [#allocation5], 4
      %s27 = int_to_ptr.vmem [resolvable:$true] %s26
      %29 = dma.hbm_to_vmem [thread:$0]  %s1, 64, %s27, [#allocation6]
    $region9: #{tpu_custom_call.1} parent=1 // pred_fallthru
      _
    // Predicated region
    $region10: #{tpu_custom_call.1} parent=1 // pred_check
      _
    $region11: #{tpu_custom_call.1} parent=1 // pred_check_branch
      %31 = sbr.rel (0) target = $region13
    $region12: #{tpu_custom_call.1} parent=1 // pred_region
      %32 = dma.done [#allocation3], 16
    $region13: #{tpu_custom_call.1} parent=1 // pred_fallthru
      _
    // Predicated region
    $region14: #{tpu_custom_call.1} parent=1 // pred_check
      _
    $region15: #{tpu_custom_call.1} parent=1 // pred_check_branch
      %34 = sbr.rel (0) target = $region17
    $region16: #{tpu_custom_call.1} parent=1 // pred_region
      %35 = dma.done [#allocation6], 64
    $region17: #{tpu_custom_call.1} parent=1 // pred_fallthru
      _
    %v36 = vld [vmem:[#allocation5] sm:$0xf]
    %v37 = vld [vmem:[#allocation2] sm:$0x1]
    %v39 = vlaneseq
    %v40 = vshrl.u32 %v39, 7
    %v41 = vsub.s32 0, %v40
    %v42 = vrot.slane %v37, %v41
    %v44 = vmul.f32 %v36, %v42
    %45 = vst [vmem:[#allocation7] sm:$0xf] %v44
    // Predicated region
    $region18: #{tpu_custom_call.1} parent=1 // pred_check
      _
    $region19: #{tpu_custom_call.1} parent=1 // pred_check_branch
      %47 = sbr.rel (0) target = $region21
    $region20: #{tpu_custom_call.1} parent=1 // pred_region
      %s49 = ssub.s32 64, 64
      %50 = vsyncadd [#allocation4], %s49
      %s52 = sshll.u32 [#allocation7], 4
      %s53 = int_to_ptr.vmem [resolvable:$true] %s52
      %55 = dma.vmem_to_hbm [thread:$0]  %s53, 64, %s2, [#allocation4]
    $region21: #{tpu_custom_call.1} parent=1 // pred_fallthru
      _
    // Predicated region
    $region22: #{tpu_custom_call.1} parent=1 // pred_check
      _
    $region23: #{tpu_custom_call.1} parent=1 // pred_check_branch
      %57 = sbr.rel (0) target = $region25
    $region24: #{tpu_custom_call.1} parent=1 // pred_region
      %58 = dma.done [#allocation4], 64
    $region25: #{tpu_custom_call.1} parent=1 // pred_fallthru
      _
    %59 = vsyncpa [#allocation3], 1
    %60 = vsyncpa [#allocation6], 1
    %61 = vsyncpa [#allocation4], 1

</llo_original>
